<compile_context>
chip_gen: v7x
topology: tpu7x:2x2x1
jax: 0.10.0
libtpu: 0.0.40
codegen_flags: <defaults>
</compile_context>

<pallas_src>
import math
import jax
import jax.numpy as jnp
from jax.experimental import pallas as pl
from jax.experimental.pallas import tpu as pltpu


def _round_up(x: int, m: int) -> int:
    return ((x + m - 1) // m) * m


# -----------------------------------------------------------------------------
# Kernel (lane-major: batch on the lane axis)
# -----------------------------------------------------------------------------
def _make_pc_mlp_kernel(num_layers, activation_function, inputs_D, in_pad,
                        sup_t, sup_m, pow_c, temp_c, has_last_d):
    inputs_D = tuple(int(c) for c in inputs_D)
    in_sz = len(inputs_D)
    temp_pos = inputs_D.index(int(temp_c))
    lo = inputs_D[0]
    contiguous = inputs_D == tuple(range(lo, lo + in_sz))

    def _act(h):
        if activation_function == 0:
            return jnp.maximum(h, 0.0)            # ReLU   (VALU)
        elif activation_function == 1:
            return jax.nn.sigmoid(h)              # Sigmoid (EUP)
        elif activation_function == 2:
            return jnp.tanh(h)                    # Tanh    (EUP)
        raise ValueError(f"Unsupported activation code {activation_function}")

    def kernel(scal_ref,     # SMEM (3,): [exp(a)/a_scal, exp(b)/b_scal, 1/div]
               xt_ref,       # VMEM (NCOLS, BT) f32  -- transposed raw input tile
               *rest):       # [last_D (1,BT)]?, hidden (W^T,b^T) pairs, (w_out,b_out), out_ref
        if has_last_d:
            lastd_ref, rest = rest[0], rest[1:]
        out_ref = rest[-1]                        # VMEM (1, BT) f32, lane-dense
        wb = rest[:-1]

        xt = xt_ref[...]                          # (NCOLS, BT) f32

        # ---- physics columns: static row slices, all lane-dense (1, BT) ----
        sa_t = xt[sup_t:sup_t + 1, :]
        sa_v = xt[sup_m:sup_m + 1, :]
        it_p = xt[pow_c:pow_c + 1, :]
        ra_t = lastd_ref[...] if has_last_d else xt[temp_c:temp_c + 1, :]

        # ---- build the (IN, BT) MLP input in-kernel (static slices) ----
        if contiguous:
            h_base = xt[lo:lo + in_sz, :]
        else:
            h_base = jnp.concatenate([xt[c:c + 1, :] for c in inputs_D], axis=0)
        if has_last_d:
            # Override the temperature *position inside inputs_D* with last_D.
            rid = jax.lax.broadcasted_iota(jnp.int32, h_base.shape, 0)
            h_base = jnp.where(rid == temp_pos, ra_t, h_base)
        if in_pad > in_sz:
            zpad = jnp.zeros((in_pad - in_sz, h_base.shape[1]), h_base.dtype)
            h_base = jnp.concatenate([h_base, zpad], axis=0)   # matches zero-padded W1^T cols
        h = h_base.astype(jnp.bfloat16)           # bf16 MXU inputs, cast in-kernel

        # ---- MLP trunk: (H, BT) = W^T @ h, f32 accumulate, f32 activations ----
        for l in range(num_layers):
            w = wb[2 * l][...]                    # (H, fi) bf16
            b = wb[2 * l + 1][...]                # (H, 1)  f32
            a = jnp.dot(w, h, preferred_element_type=jnp.float32) + b
            a = _act(a)
            h = a.astype(jnp.bfloat16) if (l + 1 < num_layers) else a

        # ---- final Linear(H, 1): multiply + sublane reduce (XLU), lane-dense ----
        w_out = wb[2 * num_layers][...]           # (H, 1) f32
        b_out = wb[2 * num_layers + 1][...]       # (1, 1) f32
        temp = jnp.sum(h * w_out, axis=0, keepdims=True) + b_out   # (1, BT)

        # ---- physics head (PositiveLinear a/b folded into fused scalars) ----
        a_eff = scal_ref[0]       # exp(a_log_weight) / a_scaling
        b_eff = scal_ref[1]       # exp(b_log_weight) / b_scaling
        inv_div = scal_ref[2]     # 1 / division_factor

        cool_effect = (ra_t - sa_t) * sa_v * a_eff
        heat_effect = it_p * b_eff
        out_ref[...] = ra_t + temp * inv_div - cool_effect + heat_effect

    return kernel


# -----------------------------------------------------------------------------
# Parameter construction (mirrors torch init: xavier_normal_ weights, zero bias,
# PositiveLinear log_weight = 0 -> exp = 1)
# -----------------------------------------------------------------------------
def init_pc_mlp_params(key, input_size, hidden, num_layers):
    sizes = [(input_size, hidden)] + [(hidden, hidden)] * (num_layers - 1) + [(hidden, 1)]
    keys = jax.random.split(key, len(sizes))
    mlp = []
    for k, (fi, fo) in zip(keys, sizes):
        std = math.sqrt(2.0 / (fi + fo))
        w = std * jax.random.normal(k, (fi, fo), jnp.float32)
        b = jnp.zeros((1, fo), jnp.float32)
        mlp.append((w, b))
    return {
        "mlp": mlp,
        "a_log_weight": jnp.zeros((), jnp.float32),
        "b_log_weight": jnp.zeros((), jnp.float32),
        "c_log_weight": jnp.zeros((), jnp.float32),
        "d_log_weight": jnp.zeros((), jnp.float32),
    }


# -----------------------------------------------------------------------------
# Wrapper: lane-major batch tiling + pallas_call
# -----------------------------------------------------------------------------
def pc_mlp_forward(params, x_, cfg, last_D=None, block_batch=16384):
    """Replicates PC_MLP.forward.

    last_D is None  -> warm_start path (RA_T from the temperature column).
    last_D is (B,1) -> temperature input (inside inputs_D) replaced, RA_T = last_D.
    """
    B, ncols = x_.shape
    num_layers = cfg["mlp_num_layers"]
    hidden = cfg["mlp_hidden_size"]
    inputs_D = tuple(int(c) for c in cfg["inputs_D"])
    in_sz = len(inputs_D)
    in_pad = _round_up(in_sz, 8)
    has_last_d = last_D is not None

    # ---- batch tiling: lanes carry the batch; bt is a multiple of 128 ----
    bt = _round_up(min(block_batch, max(B, 1)), 128)
    b_pad = _round_up(B, bt)
    if b_pad // bt < 2 and b_pad > 128:
        # v7x megacore: make sure the parallel grid axis has >= 2 steps.
        bt = max(128, _round_up(bt // 2, 128))
        b_pad = _round_up(B, bt)

    # Transposed (lane-major) raw input: single pass over x_, no gather/stack/aux.
    xt = jnp.pad(x_.astype(jnp.float32).T, ((0, 0), (0, b_pad - B)))      # (NCOLS, b_pad)

    lastd_ops, lastd_specs = [], []
    if has_last_d:
        lastd_t = jnp.pad(last_D.astype(jnp.float32).reshape(1, B),
                          ((0, 0), (0, b_pad - B)))                        # (1, b_pad)
        lastd_ops = [lastd_t]
        lastd_specs = [pl.BlockSpec((1, bt), lambda i: (0, i))]

    # ---- resident weights/biases (transposed, bf16 matmul weights) ----
    flat_wb, wb_specs = [], []
    for l, (w, b) in enumerate(params["mlp"][:num_layers]):
        wt = w.T                                                           # (H, fi)
        if l == 0 and in_pad != in_sz:
            wt = jnp.pad(wt, ((0, 0), (0, in_pad - in_sz)))                # zero cols -> exact
        flat_wb.extend([wt.astype(jnp.bfloat16), b.T.astype(jnp.float32)])  # (H,fi), (H,1)
    w_out, b_out = params["mlp"][num_layers]                               # (H,1), (1,1)
    flat_wb.extend([w_out.astype(jnp.float32), b_out.astype(jnp.float32)])
    for arr in flat_wb:
        # Full-shape block, constant index_map -> fetched once, resident across grid.
        wb_specs.append(pl.BlockSpec(arr.shape, lambda i: (0, 0)))

    # ---- fused scalars (PositiveLinear exp already folded in) ----
    a_s = float(cfg["parameter_scalings"]["a"][0])
    b_s = float(cfg["parameter_scalings"]["b"][0])
    div = float(cfg["division_factor"][0])
    scal = jnp.stack(
        [jnp.exp(params["a_log_weight"]) / a_s,
         jnp.exp(params["b_log_weight"]) / b_s,
         jnp.float32(1.0 / div)]
    ).astype(jnp.float32)                                                  # (3,)

    kernel = _make_pc_mlp_kernel(
        num_layers, cfg["activation_function"], inputs_D, in_pad,
        int(cfg["supply_T_column"]), int(cfg["supply_m_column"]),
        int(cfg["power_column"]), int(cfg["temperature_column"]), has_last_d)

    grid = (b_pad // bt,)
    in_specs = ([pl.BlockSpec(memory_space=pltpu.MemorySpace.SMEM),        # fused scalars
                 pl.BlockSpec((ncols, bt), lambda i: (0, i))]              # transposed x_ tile
                + lastd_specs + wb_specs)
    out_specs = pl.BlockSpec((1, bt), lambda i: (0, i))                    # lane-dense output

    # ---- VMEM budget derived from the actual buffers (2x margin, <= 64 MiB) ----
    stream_bytes = ncols * bt * 4 + (bt * 4 if has_last_d else 0) + bt * 4
    weight_bytes = sum(int(a.size) * a.dtype.itemsize for a in flat_wb)
    interm_bytes = 4 * hidden * bt * 4
    vmem_limit = 2 * stream_bytes + 2 * weight_bytes + interm_bytes
    vmem_limit = int(min(64 * 1024 * 1024, max(16 * 1024 * 1024, 2 * vmem_limit)))

    flops = 2 * b_pad * (in_pad * hidden + (num_layers - 1) * hidden * hidden + hidden)
    transcendentals = b_pad * hidden * num_layers if cfg["activation_function"] in (1, 2) else 0
    bytes_accessed = (int(xt.size) * 4 + (b_pad * 4 if has_last_d else 0)
                      + b_pad * 4 + weight_bytes + int(scal.size) * 4)

    out = pl.pallas_call(
        kernel,
        grid=grid,
        out_shape=jax.ShapeDtypeStruct((1, b_pad), jnp.float32),
        in_specs=in_specs,
        out_specs=out_specs,
        compiler_params=pltpu.CompilerParams(
            dimension_semantics=("parallel",),     # megacore sharding on v7x
            vmem_limit_bytes=vmem_limit,
        ),
        cost_estimate=pl.CostEstimate(
            flops=int(flops),
            transcendentals=int(transcendentals),
            bytes_accessed=int(bytes_accessed),
        ),
    )(scal, xt, *lastd_ops, *flat_wb)

    return out[0, :B][:, None]                                             # (B, 1)


# -----------------------------------------------------------------------------
# Pure-JAX references (f32, and a bf16-matmul mirror of the kernel)
# -----------------------------------------------------------------------------
def pc_mlp_reference(params, x_, cfg, last_D=None, matmul_dtype=jnp.float32):
    inputs_D = list(cfg["inputs_D"])
    x = x_[:, jnp.asarray(inputs_D, dtype=jnp.int32)]
    SA_T = x_[:, cfg["supply_T_column"]][:, None]
    SA_V = x_[:, cfg["supply_m_column"]][:, None]
    IT_P = x_[:, cfg["power_column"]][:, None]
    if last_D is None:
        RA_T = x_[:, cfg["temperature_column"]][:, None]
    else:
        pos = inputs_D.index(cfg["temperature_column"])   # position inside inputs_D
        x = x.at[:, pos].set(last_D[:, 0])
        RA_T = last_D

    acts = {0: lambda h: jnp.maximum(h, 0.0), 1: jax.nn.sigmoid, 2: jnp.tanh}
    act = acts[cfg["activation_function"]]
    L = cfg["mlp_num_layers"]

    h = x.astype(matmul_dtype)
    for l, (w, b) in enumerate(params["mlp"][:L]):
        a = jnp.dot(h, w.astype(matmul_dtype), preferred_element_type=jnp.float32) + b
        a = act(a)
        h = a.astype(matmul_dtype) if (l + 1 < L) else a
    w_out, b_out = params["mlp"][L]
    temp = h @ w_out + b_out

    a_s = cfg["parameter_scalings"]["a"][0]
    b_s = cfg["parameter_scalings"]["b"][0]
    div = cfg["division_factor"][0]
    cool = (RA_T - SA_T) * SA_V * jnp.exp(params["a_log_weight"]) / a_s
    heat = IT_P * jnp.exp(params["b_log_weight"]) / b_s
    return RA_T + temp / div - cool + heat


# -----------------------------------------------------------------------------
# Demo
# -----------------------------------------------------------------------------
if __name__ == "__main__":
    cfg = dict(
        supply_T_column=6,
        supply_m_column=7,
        power_column=2,
        temperature_column=3,
        inputs_D=[0, 1, 2, 3, 4, 5],
        division_factor=[10.0],
        activation_function=2,          # tanh
        mlp_hidden_size=32,
        mlp_num_layers=2,
        parameter_scalings={"a": [5.0], "b": [3.0], "c": [1.0], "d": [1.0]},
    )

    key = jax.random.PRNGKey(0)
    k_param, k_data = jax.random.split(key)

    params = init_pc_mlp_params(
        k_param, len(cfg["inputs_D"]), cfg["mlp_hidden_size"], cfg["mlp_num_layers"]
    )

    B, NCOLS = 8, 8
    x_ = jax.random.normal(k_data, (B, NCOLS), jnp.float32)

    # warm-start step (RA_T from temperature column)
    out_warm = jax.block_until_ready(pc_mlp_forward(params, x_, cfg, last_D=None))
    # subsequent step (RA_T = previous output, temperature input overridden)
    out_next = jax.block_until_ready(pc_mlp_forward(params, x_, cfg, last_D=out_warm))

    # --- self-check 1: bf16-matmul mirror of the kernel (tight tolerance) ---
    ref_warm_bf = pc_mlp_reference(params, x_, cfg, last_D=None, matmul_dtype=jnp.bfloat16)
    ref_next_bf = pc_mlp_reference(params, x_, cfg, last_D=out_warm, matmul_dtype=jnp.bfloat16)
    assert jnp.allclose(out_warm, ref_warm_bf, atol=1e-4, rtol=1e-4)
    assert jnp.allclose(out_next, ref_next_bf, atol=1e-4, rtol=1e-4)

    # --- self-check 2: pure-f32 reference (loose tolerance, bf16 matmul inputs) ---
    ref_warm_f32 = pc_mlp_reference(params, x_, cfg, last_D=None)
    ref_next_f32 = pc_mlp_reference(params, x_, cfg, last_D=ref_warm_f32)
    assert jnp.allclose(out_warm, ref_warm_f32, atol=2e-2, rtol=2e-2)
    assert jnp.allclose(out_next, ref_next_f32, atol=2e-2, rtol=2e-2)

    print("KERNEL_OK")
</pallas_src>

<mosaic_0001>
module attributes {stable_mosaic.version = 11 : i64} {
  func.func @kernel(%arg0: i32, %arg1: memref<3xf32, #tpu.memory_space<smem>>, %arg2: memref<8x128xf32, #tpu.memory_space<vmem>>, %arg3: memref<32x8xbf16, #tpu.memory_space<vmem>>, %arg4: memref<32x1xf32, #tpu.memory_space<vmem>>, %arg5: memref<32x32xbf16, #tpu.memory_space<vmem>>, %arg6: memref<32x1xf32, #tpu.memory_space<vmem>>, %arg7: memref<32x1xf32, #tpu.memory_space<vmem>>, %arg8: memref<1x1xf32, #tpu.memory_space<vmem>>, %arg9: memref<1x128xf32, #tpu.memory_space<vmem>>) attributes {dimension_semantics = [#tpu.dimension_semantics<parallel>], iteration_bounds = array<i64: 1>, scalar_prefetch = 0 : i64, scratch_operands = 0 : i64, tpu.core_type = #tpu.core_type<tc>, window_params = [{transform_indices = @transform_0, window_bounds = array<i64: 3>}, {transform_indices = @transform_1, window_bounds = array<i64: 8, 128>}, {pipeline_mode = #tpu.pipeline_mode<synchronous>, transform_indices = @transform_2, window_bounds = array<i64: 32, 8>}, {pipeline_mode = #tpu.pipeline_mode<synchronous>, transform_indices = @transform_3, window_bounds = array<i64: 32, 1>}, {pipeline_mode = #tpu.pipeline_mode<synchronous>, transform_indices = @transform_4, window_bounds = array<i64: 32, 32>}, {pipeline_mode = #tpu.pipeline_mode<synchronous>, transform_indices = @transform_5, window_bounds = array<i64: 32, 1>}, {pipeline_mode = #tpu.pipeline_mode<synchronous>, transform_indices = @transform_6, window_bounds = array<i64: 32, 1>}, {pipeline_mode = #tpu.pipeline_mode<synchronous>, transform_indices = @transform_7, window_bounds = array<i64: 1, 1>}, {transform_indices = @transform_8, window_bounds = array<i64: 1, 128>}]} {
    %c0 = arith.constant 0 : index
    %c0_0 = arith.constant 0 : index
    %0 = vector.load %arg2[%c0, %c0_0] : memref<8x128xf32, #tpu.memory_space<vmem>>, vector<8x128xf32>
    %1 = vector.extract_strided_slice %0 {offsets = [6, 0], sizes = [1, 128], strides = [1, 1]} : vector<8x128xf32> to vector<1x128xf32>
    %2 = vector.extract_strided_slice %0 {offsets = [7, 0], sizes = [1, 128], strides = [1, 1]} : vector<8x128xf32> to vector<1x128xf32>
    %3 = vector.extract_strided_slice %0 {offsets = [2, 0], sizes = [1, 128], strides = [1, 1]} : vector<8x128xf32> to vector<1x128xf32>
    %4 = vector.extract_strided_slice %0 {offsets = [3, 0], sizes = [1, 128], strides = [1, 1]} : vector<8x128xf32> to vector<1x128xf32>
    %5 = vector.extract_strided_slice %0 {offsets = [0, 0], sizes = [6, 128], strides = [1, 1]} : vector<8x128xf32> to vector<6x128xf32>
    %cst = arith.constant 0.000000e+00 : f32
    %6 = vector.broadcast %cst : f32 to vector<2x128xf32>
    %7 = tpu.concatenate %5, %6 in 0 : vector<6x128xf32>, vector<2x128xf32> -> vector<8x128xf32>
    %8 = arith.truncf %7 : vector<8x128xf32> to vector<8x128xbf16>
    %c0_1 = arith.constant 0 : index
    %c0_2 = arith.constant 0 : index
    %9 = vector.load %arg3[%c0_1, %c0_2] : memref<32x8xbf16, #tpu.memory_space<vmem>>, vector<32x8xbf16>
    %c0_3 = arith.constant 0 : index
    %c0_4 = arith.constant 0 : index
    %10 = vector.load %arg4[%c0_3, %c0_4] : memref<32x1xf32, #tpu.memory_space<vmem>>, vector<32x1xf32>
    %cst_5 = arith.constant dense<0.000000e+00> : vector<32x128xf32>
    %11 = tpu.matmul %9, %8, %cst_5 {dimension_numbers = #tpu.dot_dimension_numbers<[1], [0], [0], [1], [0, 0, 1, 1], [], []>} : vector<32x8xbf16>, vector<8x128xbf16>, vector<32x128xf32> -> vector<32x128xf32>
    %12 = vector.broadcast %10 : vector<32x1xf32> to vector<32x128xf32>
    %13 = arith.addf %11, %12 : vector<32x128xf32>
    %14 = math.tanh %13 : vector<32x128xf32>
    %15 = arith.truncf %14 : vector<32x128xf32> to vector<32x128xbf16>
    %c0_6 = arith.constant 0 : index
    %c0_7 = arith.constant 0 : index
    %16 = vector.load %arg5[%c0_6, %c0_7] : memref<32x32xbf16, #tpu.memory_space<vmem>>, vector<32x32xbf16>
    %c0_8 = arith.constant 0 : index
    %c0_9 = arith.constant 0 : index
    %17 = vector.load %arg6[%c0_8, %c0_9] : memref<32x1xf32, #tpu.memory_space<vmem>>, vector<32x1xf32>
    %cst_10 = arith.constant dense<0.000000e+00> : vector<32x128xf32>
    %18 = tpu.matmul %16, %15, %cst_10 {dimension_numbers = #tpu.dot_dimension_numbers<[1], [0], [0], [1], [0, 0, 1, 1], [], []>} : vector<32x32xbf16>, vector<32x128xbf16>, vector<32x128xf32> -> vector<32x128xf32>
    %19 = vector.broadcast %17 : vector<32x1xf32> to vector<32x128xf32>
    %20 = arith.addf %18, %19 : vector<32x128xf32>
    %21 = math.tanh %20 : vector<32x128xf32>
    %c0_11 = arith.constant 0 : index
    %c0_12 = arith.constant 0 : index
    %22 = vector.load %arg7[%c0_11, %c0_12] : memref<32x1xf32, #tpu.memory_space<vmem>>, vector<32x1xf32>
    %c0_13 = arith.constant 0 : index
    %c0_14 = arith.constant 0 : index
    %23 = vector.load %arg8[%c0_13, %c0_14] : memref<1x1xf32, #tpu.memory_space<vmem>>, vector<1x1xf32>
    %24 = vector.broadcast %22 : vector<32x1xf32> to vector<32x128xf32>
    %25 = arith.mulf %21, %24 : vector<32x128xf32>
    %cst_15 = arith.constant dense<0.000000e+00> : vector<128xf32>
    %26 = vector.multi_reduction <add>, %25, %cst_15 [0] : vector<32x128xf32> to vector<128xf32>
    %27 = vector.shape_cast %26 : vector<128xf32> to vector<1x128xf32>
    %28 = vector.broadcast %23 : vector<1x1xf32> to vector<1x128xf32>
    %29 = arith.addf %27, %28 : vector<1x128xf32>
    %c0_16 = arith.constant 0 : index
    %30 = memref.load %arg1[%c0_16] : memref<3xf32, #tpu.memory_space<smem>>
    %c1 = arith.constant 1 : index
    %31 = memref.load %arg1[%c1] : memref<3xf32, #tpu.memory_space<smem>>
    %c2 = arith.constant 2 : index
    %32 = memref.load %arg1[%c2] : memref<3xf32, #tpu.memory_space<smem>>
    %33 = arith.subf %4, %1 : vector<1x128xf32>
    %34 = arith.mulf %33, %2 : vector<1x128xf32>
    %35 = vector.broadcast %30 : f32 to vector<1x128xf32>
    %36 = arith.mulf %34, %35 : vector<1x128xf32>
    %37 = vector.broadcast %31 : f32 to vector<1x128xf32>
    %38 = arith.mulf %3, %37 : vector<1x128xf32>
    %39 = vector.broadcast %32 : f32 to vector<1x128xf32>
    %40 = arith.mulf %29, %39 : vector<1x128xf32>
    %41 = arith.addf %4, %40 : vector<1x128xf32>
    %42 = arith.subf %41, %36 : vector<1x128xf32>
    %43 = arith.addf %42, %38 : vector<1x128xf32>
    %c0_17 = arith.constant 0 : index
    %c0_18 = arith.constant 0 : index
    %44 = vector.load %arg9[%c0_17, %c0_18] : memref<1x128xf32, #tpu.memory_space<vmem>>, vector<1x128xf32>
    tpu.vector_store %arg9[%c0_17, %c0_18], %43 {strides = array<i32>} : memref<1x128xf32, #tpu.memory_space<vmem>>, vector<1x128xf32>,
    return
  }
  func.func @transform_0(%arg0: i32) -> i32 {
    %c0_i32 = arith.constant 0 : i32
    %c0_i32_0 = arith.constant 0 : i32
    return %c0_i32 : i32
  }
  func.func @transform_1(%arg0: i32) -> (i32, i32) {
    %c0_i32 = arith.constant 0 : i32
    %c0_i32_0 = arith.constant 0 : i32
    return %c0_i32, %arg0 : i32, i32
  }
  func.func @transform_2(%arg0: i32) -> (i32, i32) {
    %c0_i32 = arith.constant 0 : i32
    %c0_i32_0 = arith.constant 0 : i32
    %c0_i32_1 = arith.constant 0 : i32
    return %c0_i32, %c0_i32_0 : i32, i32
  }
  func.func @transform_3(%arg0: i32) -> (i32, i32) {
    %c0_i32 = arith.constant 0 : i32
    %c0_i32_0 = arith.constant 0 : i32
    %c0_i32_1 = arith.constant 0 : i32
    return %c0_i32, %c0_i32_0 : i32, i32
  }
  func.func @transform_4(%arg0: i32) -> (i32, i32) {
    %c0_i32 = arith.constant 0 : i32
    %c0_i32_0 = arith.constant 0 : i32
    %c0_i32_1 = arith.constant 0 : i32
    return %c0_i32, %c0_i32_0 : i32, i32
  }
  func.func @transform_5(%arg0: i32) -> (i32, i32) {
    %c0_i32 = arith.constant 0 : i32
    %c0_i32_0 = arith.constant 0 : i32
    %c0_i32_1 = arith.constant 0 : i32
    return %c0_i32, %c0_i32_0 : i32, i32
  }
  func.func @transform_6(%arg0: i32) -> (i32, i32) {
    %c0_i32 = arith.constant 0 : i32
    %c0_i32_0 = arith.constant 0 : i32
    %c0_i32_1 = arith.constant 0 : i32
    return %c0_i32, %c0_i32_0 : i32, i32
  }
  func.func @transform_7(%arg0: i32) -> (i32, i32) {
    %c0_i32 = arith.constant 0 : i32
    %c0_i32_0 = arith.constant 0 : i32
    %c0_i32_1 = arith.constant 0 : i32
    return %c0_i32, %c0_i32_0 : i32, i32
  }
  func.func @transform_8(%arg0: i32) -> (i32, i32) {
    %c0_i32 = arith.constant 0 : i32
    %c0_i32_0 = arith.constant 0 : i32
    return %c0_i32, %arg0 : i32, i32
  }
}

</mosaic_0001>

<llo_original>
// kernel: tpu_custom_call.1
$region0: #{tpu_custom_call.1}
  #allocation0 [shape = 'u32[]', space=smem, size = 0x4, offset = 0x4, fixed_abs, tag = 'smem constant byte address 0x4 - core index']
  #allocation1 [shape = 'u32[144,128]{1,0:T(1,128)}', space=vmem, size = 0x12000, scoped, tag = 'internal scratch']
  #allocation2 [shape = 'f32[1,1]{1,0:T(1,128)S(1)}', space=vmem, size = 0x200, scoped, tag = 'scoped memory for tpu_custom_call.1']
  %s0 = inlined_call_operand.vmem [shape: f32[3], index: 0, kind: input, shape index: {}]
  %s1 = inlined_call_operand.vmem [shape: f32[8,128], index: 1, kind: input, shape index: {}]
  %s2 = inlined_call_operand.vmem [shape: bf16[32,8], index: 2, kind: input, shape index: {}]
  %s3 = inlined_call_operand.vmem [shape: f32[32,1], index: 3, kind: input, shape index: {}]
  %s4 = inlined_call_operand.vmem [shape: bf16[32,32], index: 4, kind: input, shape index: {}]
  %s5 = inlined_call_operand.vmem [shape: f32[32,1], index: 5, kind: input, shape index: {}]
  %s6 = inlined_call_operand.vmem [shape: f32[32,1], index: 6, kind: input, shape index: {}]
  %s7 = inlined_call_operand.<no memory space> [shape: f32[1,1], index: 7, kind: input, shape index: {}]
  %s8 = inlined_call_operand.hbm [shape: f32[1,128], index: 8, kind: output, shape index: {}]
  %s9 = sld [smem:[#allocation0]]
  $region46: #{tpu_custom_call.1} parent=0
    _
  %s11 = ssub.s32 1, %s9
  %s12 = scalar_select 0, %s11, %s9
  %v13 = vstv %s7
  %14 = vst [vmem:[#allocation2] sm:$0x1] %v13
  $region1: #{tpu_custom_call.1} parent=0
    #allocation3 [shape = 'u8[512]{0}', space=smem, size = 0x200, scoped, tag = 'input window, operand 0, single buffered']
    #allocation4 [shape = 's32[1]{0}', space=sflag, size = 0x4, scoped, tag = 'scoped memory for tpu_custom_call.1']
    #allocation5 [shape = 's32[1]{0}', space=sflag, size = 0x4, scoped, tag = 'scoped memory for tpu_custom_call.1']
    #allocation6 [shape = 'u8[512]{0}', space=vmem, size = 0x400, scoped, tag = 'output window, operand 0, single buffered']
    %15 = vsyncpa [#allocation5], 0
    %16 = vsyncpa [#allocation4], 0
    // Predicated region
    $region2: #{tpu_custom_call.1} parent=1 // pred_check
      _
    $region3: #{tpu_custom_call.1} parent=1 // pred_check_branch
      %18 = sbr.rel (0) target = $region5
    $region4: #{tpu_custom_call.1} parent=1 // pred_region
      %s20 = ssub.s32 16, 16
      %21 = vsyncadd [#allocation5], %s20
      %s23 = sshll.u32 %s0, 4
      %s24 = int_to_ptr.vmem [resolvable:$true] %s23
      %26 = dma.vmem_to_smem %s24, 16, [#allocation3], [#allocation5]
    $region5: #{tpu_custom_call.1} parent=1 // pred_fallthru
      _
    // Predicated region
    $region6: #{tpu_custom_call.1} parent=1 // pred_check
      _
    $region7: #{tpu_custom_call.1} parent=1 // pred_check_branch
      %28 = sbr.rel (0) target = $region9
    $region8: #{tpu_custom_call.1} parent=1 // pred_region
      _
    $region9: #{tpu_custom_call.1} parent=1 // pred_fallthru
      _
    // Predicated region
    $region10: #{tpu_custom_call.1} parent=1 // pred_check
      _
    $region11: #{tpu_custom_call.1} parent=1 // pred_check_branch
      %30 = sbr.rel (0) target = $region13
    $region12: #{tpu_custom_call.1} parent=1 // pred_region
      _
    $region13: #{tpu_custom_call.1} parent=1 // pred_fallthru
      _
    // Predicated region
    $region14: #{tpu_custom_call.1} parent=1 // pred_check
      _
    $region15: #{tpu_custom_call.1} parent=1 // pred_check_branch
      %32 = sbr.rel (0) target = $region17
    $region16: #{tpu_custom_call.1} parent=1 // pred_region
      _
    $region17: #{tpu_custom_call.1} parent=1 // pred_fallthru
      _
    // Predicated region
    $region18: #{tpu_custom_call.1} parent=1 // pred_check
      _
    $region19: #{tpu_custom_call.1} parent=1 // pred_check_branch
      %34 = sbr.rel (0) target = $region21
    $region20: #{tpu_custom_call.1} parent=1 // pred_region
      _
    $region21: #{tpu_custom_call.1} parent=1 // pred_fallthru
      _
    // Predicated region
    $region22: #{tpu_custom_call.1} parent=1 // pred_check
      _
    $region23: #{tpu_custom_call.1} parent=1 // pred_check_branch
      %36 = sbr.rel (0) target = $region25
    $region24: #{tpu_custom_call.1} parent=1 // pred_region
      _
    $region25: #{tpu_custom_call.1} parent=1 // pred_fallthru
      _
    // Predicated region
    $region26: #{tpu_custom_call.1} parent=1 // pred_check
      _
    $region27: #{tpu_custom_call.1} parent=1 // pred_check_branch
      %38 = sbr.rel (0) target = $region29
    $region28: #{tpu_custom_call.1} parent=1 // pred_region
      _
    $region29: #{tpu_custom_call.1} parent=1 // pred_fallthru
      _
    // Predicated region
    $region30: #{tpu_custom_call.1} parent=1 // pred_check
      _
    $region31: #{tpu_custom_call.1} parent=1 // pred_check_branch
      %40 = sbr.rel (0) target = $region33
    $region32: #{tpu_custom_call.1} parent=1 // pred_region
      _
    $region33: #{tpu_custom_call.1} parent=1 // pred_fallthru
      _
    // Predicated region
    $region34: #{tpu_custom_call.1} parent=1 // pred_check
      _
    $region35: #{tpu_custom_call.1} parent=1 // pred_check_branch
      %42 = sbr.rel (0) target = $region37
    $region36: #{tpu_custom_call.1} parent=1 // pred_region
      %43 = dma.done [#allocation5], 16
    $region37: #{tpu_custom_call.1} parent=1 // pred_fallthru
      _
    %44 = sfence
    %v46 = vld [vmem:[%s1] sm:$0xff]
    %vm47 = vcmask 1045504
    %v48 = vsel %vm47, %v46, 0.0
    %v49 = vpack.c.bf16 %v48, %v48
    %v50 = vld [vmem:[%s2] sm:$0xf]
    %v51 = vld [vmem:[%s2 + $0x4] sm:$0xf]
    %v52 = vld [vmem:[%s2 + $0x8] sm:$0xf]
    %v53 = vld [vmem:[%s2 + $0xc] sm:$0xf]
    %v54 = vld [vmem:[%s3] sm:$0xff]
    %v55 = vld [vmem:[%s3 + $0x8] sm:$0xff]
    %v56 = vld [vmem:[%s3 + $0x10] sm:$0xff]
    %v57 = vld [vmem:[%s3 + $0x18] sm:$0xff]
    %59 = vset.pattern.permute.xlu0 0
    %60 = vperm.xlu0 %59, %v54
    %v61 = vpop.permute.xlu0 %60
    %64 = vset.pattern.permute.xlu0 0
    %65 = vperm.xlu0 %64, %v55
    %v66 = vpop.permute.xlu0 %65
    %69 = vset.pattern.permute.xlu0 0
    %70 = vperm.xlu0 %69, %v56
    %v71 = vpop.permute.xlu0 %70
    %74 = vset.pattern.permute.xlu0 0
    %75 = vperm.xlu0 %74, %v57
    %v76 = vpop.permute.xlu0 %75
    %v82 = vunpack.c.l.b16 %v50
    %v83 = vunpack.c.l.b16 %v51
    %v84 = vunpack.c.l.b16 %v52
    %v85 = vunpack.c.l.b16 %v53
    %v86 = vpack.c.b16 %v83, %v82
    %v87 = vpack.c.b16 %v85, %v84
    %vm88 = vcmask 64512
    %v90 = vsel %vm88, %v86, 0
    %v93 = vsel %vm88, %v87, 0
    %vm95 = vcmask 1043456
    %v97 = vsel %vm95, %v49, 0
    %99 = vmatprep.subr.bf16.mxu0 0
    %100 = vmatpush1.bf16.msra.mxu0 %v97
    %101 = vmatprep.subr.bf16.mxu0 0
    %102 = vmatpush1.bf16.msra.mxu0 0
    %103 = vmatprep.subr.bf16.mxu0 0
    %104 = vmatpush1.bf16.msra.mxu0 0
    %105 = vmatprep.subr.bf16.mxu0 0
    %106 = vmatpush1.bf16.msra.mxu0 0
    %107 = vmatprep.subr.bf16.mxu0 0
    %108 = vmatpush1.bf16.msra.mxu0 0
    %109 = vmatprep.subr.bf16.mxu0 0
    %110 = vmatpush1.bf16.msra.mxu0 0
    %111 = vmatprep.subr.bf16.mxu0 0
    %112 = vmatpush1.bf16.msra.mxu0 0
    %113 = vmatprep.subr.bf16.mxu0 0
    %114 = vmatpush1.bf16.msra.mxu0 0
    %115 = vmatprep.subr.bf16.mxu0 0
    %116 = vmatpush1.bf16.msra.mxu0 0
    %117 = vmatprep.subr.bf16.mxu0 0
    %118 = vmatpush1.bf16.msra.mxu0 0
    %119 = vmatprep.subr.bf16.mxu0 0
    %120 = vmatpush1.bf16.msra.mxu0 0
    %121 = vmatprep.subr.bf16.mxu0 0
    %122 = vmatpush1.bf16.msra.mxu0 0
    %123 = vmatprep.subr.bf16.mxu0 0
    %124 = vmatpush1.bf16.msra.mxu0 0
    %125 = vmatprep.subr.bf16.mxu0 0
    %126 = vmatpush1.bf16.msra.mxu0 0
    %127 = vmatprep.subr.bf16.mxu0 0
    %128 = vmatpush1.bf16.msra.mxu0 0
    %129 = vmatprep.subr.bf16.mxu0 0
    %130 = vmatpush1.bf16.msra.mxu0 0
    %131 = vmatprep.mubr.bf16.mxu0 0
    %132 = vmatmul.mubr.bf16.gmra.mrb[0].mxu0 %v90
    %v133 = vpop.f32.mrb[0].mxu0
    %v134 = vadd.f32 %v61, %v133
    %v135 = vpop.f32.mrb[0].mxu0
    %v136 = vpop.f32.mrb[0].mxu0
    %v137 = vadd.f32 %v66, %v136
    %v138 = vpop.f32.mrb[0].mxu0
    %139 = vmatprep.mubr.bf16.mxu0 0
    %140 = vmatmul.mubr.bf16.gmra.mrb[0].mxu0 %v93
    %v141 = vpop.f32.mrb[0].mxu0
    %v142 = vadd.f32 %v71, %v141
    %v143 = vpop.f32.mrb[0].mxu0
    %v144 = vpop.f32.mrb[0].mxu0
    %v145 = vadd.f32 %v76, %v144
    %v146 = vpop.f32.mrb[0].mxu0
    %147 = vdwg.mxu0
    %v148 = vtanh.pop %v134
    %v149 = vtanh.pop %v137
    %v150 = vtanh.pop %v142
    %v151 = vtanh.pop %v145
    %v152 = vpack.c.bf16 %v149, %v148
    %v153 = vpack.c.bf16 %v151, %v150
    %v154 = vld [vmem:[%s4] sm:$0xf]
    %v155 = vld [vmem:[%s4 + $0x4] sm:$0xf]
    %v156 = vld [vmem:[%s4 + $0x8] sm:$0xf]
    %v157 = vld [vmem:[%s4 + $0xc] sm:$0xf]
    %v158 = vld [vmem:[%s5] sm:$0xff]
    %v159 = vld [vmem:[%s5 + $0x8] sm:$0xff]
    %v160 = vld [vmem:[%s5 + $0x10] sm:$0xff]
    %v161 = vld [vmem:[%s5 + $0x18] sm:$0xff]
    %163 = vset.pattern.permute.xlu0 0
    %164 = vperm.xlu0 %163, %v158
    %v165 = vpop.permute.xlu0 %164
    %168 = vset.pattern.permute.xlu0 0
    %169 = vperm.xlu0 %168, %v159
    %v170 = vpop.permute.xlu0 %169
    %173 = vset.pattern.permute.xlu0 0
    %174 = vperm.xlu0 %173, %v160
    %v175 = vpop.permute.xlu0 %174
    %178 = vset.pattern.permute.xlu0 0
    %179 = vperm.xlu0 %178, %v161
    %v180 = vpop.permute.xlu0 %179
    %v186 = vunpack.c.l.b16 %v154
    %v187 = vunpack.c.l.b16 %v155
    %v188 = vunpack.c.l.b16 %v156
    %v189 = vunpack.c.l.b16 %v157
    %v190 = vpack.c.b16 %v187, %v186
    %v191 = vpack.c.b16 %v189, %v188
    %vm192 = vcmask 261120
    %v194 = vsel %vm192, %v190, 0
    %v197 = vsel %vm192, %v191, 0
    %199 = vmatprep.subr.bf16.mxu0 0
    %200 = vmatpush1.bf16.msra.mxu0 %v152
    %201 = vmatprep.subr.bf16.mxu0 0
    %202 = vmatpush1.bf16.msra.mxu0 %v153
    %203 = vmatprep.subr.bf16.mxu0 0
    %204 = vmatpush1.bf16.msra.mxu0 0
    %205 = vmatprep.subr.bf16.mxu0 0
    %206 = vmatpush1.bf16.msra.mxu0 0
    %207 = vmatprep.subr.bf16.mxu0 0
    %208 = vmatpush1.bf16.msra.mxu0 0
    %209 = vmatprep.subr.bf16.mxu0 0
    %210 = vmatpush1.bf16.msra.mxu0 0
    %211 = vmatprep.subr.bf16.mxu0 0
    %212 = vmatpush1.bf16.msra.mxu0 0
    %213 = vmatprep.subr.bf16.mxu0 0
    %214 = vmatpush1.bf16.msra.mxu0 0
    %215 = vmatprep.subr.bf16.mxu0 0
    %216 = vmatpush1.bf16.msra.mxu0 0
    %217 = vmatprep.subr.bf16.mxu0 0
    %218 = vmatpush1.bf16.msra.mxu0 0
    %219 = vmatprep.subr.bf16.mxu0 0
    %220 = vmatpush1.bf16.msra.mxu0 0
    %221 = vmatprep.subr.bf16.mxu0 0
    %222 = vmatpush1.bf16.msra.mxu0 0
    %223 = vmatprep.subr.bf16.mxu0 0
    %224 = vmatpush1.bf16.msra.mxu0 0
    %225 = vmatprep.subr.bf16.mxu0 0
    %226 = vmatpush1.bf16.msra.mxu0 0
    %227 = vmatprep.subr.bf16.mxu0 0
    %228 = vmatpush1.bf16.msra.mxu0 0
    %229 = vmatprep.subr.bf16.mxu0 0
    %230 = vmatpush1.bf16.msra.mxu0 0
    %231 = vmatprep.mubr.bf16.mxu0 0
    %232 = vmatmul.mubr.bf16.gmra.mrb[0].mxu0 %v194
    %v233 = vpop.f32.mrb[0].mxu0
    %v234 = vadd.f32 %v165, %v233
    %v235 = vpop.f32.mrb[0].mxu0
    %v236 = vpop.f32.mrb[0].mxu0
    %v237 = vadd.f32 %v170, %v236
    %v238 = vpop.f32.mrb[0].mxu0
    %239 = vmatprep.mubr.bf16.mxu0 0
    %240 = vmatmul.mubr.bf16.gmra.mrb[0].mxu0 %v197
    %v241 = vpop.f32.mrb[0].mxu0
    %v242 = vadd.f32 %v175, %v241
    %v243 = vpop.f32.mrb[0].mxu0
    %v244 = vpop.f32.mrb[0].mxu0
    %v245 = vadd.f32 %v180, %v244
    %v246 = vpop.f32.mrb[0].mxu0
    %247 = vdwg.mxu0
    %v248 = vtanh.pop %v234
    %v249 = vtanh.pop %v237
    %v250 = vtanh.pop %v242
    %v251 = vtanh.pop %v245
    %v252 = vld [vmem:[%s6] sm:$0xff]
    %v253 = vld [vmem:[%s6 + $0x8] sm:$0xff]
    %v254 = vld [vmem:[%s6 + $0x10] sm:$0xff]
    %v255 = vld [vmem:[%s6 + $0x18] sm:$0xff]
    %v256 = vld [vmem:[#allocation2] sm:$0x1]
    %258 = vset.pattern.permute.xlu0 0
    %259 = vperm.xlu0 %258, %v252
    %v260 = vpop.permute.xlu0 %259
    %263 = vset.pattern.permute.xlu0 0
    %264 = vperm.xlu0 %263, %v253
    %v265 = vpop.permute.xlu0 %264
    %268 = vset.pattern.permute.xlu0 0
    %269 = vperm.xlu0 %268, %v254
    %v270 = vpop.permute.xlu0 %269
    %273 = vset.pattern.permute.xlu0 0
    %274 = vperm.xlu0 %273, %v255
    %v275 = vpop.permute.xlu0 %274
    %v277 = vmul.f32 %v248, %v260
    %v278 = vmul.f32 %v249, %v265
    %v279 = vmul.f32 %v250, %v270
    %v280 = vmul.f32 %v251, %v275
    %v281 = vadd.f32 %v277, %v278
    %v282 = vadd.f32 %v281, %v279
    %v283 = vadd.f32 %v282, %v280
    %v284 = vrot.slane %v283, 4
    %v285 = vadd.f32 %v283, %v284
    %v286 = vrot.slane %v285, 2
    %v287 = vadd.f32 %v285, %v286
    %v288 = vrot.slane %v287, 1
    %v289 = vadd.f32 %v287, %v288
    %291 = vset.pattern.permute.xlu0 0
    %292 = vperm.xlu0 %291, %v256
    %v293 = vpop.permute.xlu0 %292
    %v295 = vlaneseq
    %v296 = vshrl.u32 %v295, 7
    %v297 = vsub.s32 0, %v296
    %v298 = vrot.slane %v293, %v297
    %v299 = vadd.f32 %v289, %v298
    %s300 = sld [smem:[#allocation3]]
    %s301 = sld [smem:[#allocation3 + $0x1]]
    %s302 = sld [smem:[#allocation3 + $0x2]]
    %v304 = vrot.slane %v46, 3
    %v306 = vsub.f32 %v46, %v304
    %v307 = vrot.slane %v46, 4
    %v309 = vmul.f32 %v306, %v307
    %v310 = vstv %s300
    %v311 = vmul.f32 %v309, %v310
    %v312 = vstv %s301
    %v313 = vmul.f32 %v46, %v312
    %v314 = vstv %s302
    %v315 = vmul.f32 %v299, %v314
    %v316 = vadd.f32 %v46, %v315
    %v317 = vsub.f32 %v316, %v311
    %v319 = vrot.slane %v313, 7
    %v321 = vadd.f32 %v317, %v319
    %322 = vst [vmem:[#allocation6 - $0x3] sm:$0x8] %v321
    // Predicated region
    $region38: #{tpu_custom_call.1} parent=1 // pred_check
      _
    $region39: #{tpu_custom_call.1} parent=1 // pred_check_branch
      %324 = sbr.rel (0) target = $region41
    $region40: #{tpu_custom_call.1} parent=1 // pred_region
      %s326 = ssub.s32 16, 16
      %327 = vsyncadd [#allocation4], %s326
      %s329 = sshll.u32 [#allocation6], 4
      %s330 = int_to_ptr.vmem [resolvable:$true] %s329
      %332 = dma.vmem_to_hbm [thread:$0]  %s330, 16, %s8, [#allocation4]
    $region41: #{tpu_custom_call.1} parent=1 // pred_fallthru
      _
    // Predicated region
    $region42: #{tpu_custom_call.1} parent=1 // pred_check
      _
    $region43: #{tpu_custom_call.1} parent=1 // pred_check_branch
      %334 = sbr.rel (0) target = $region45
    $region44: #{tpu_custom_call.1} parent=1 // pred_region
      %335 = dma.done [#allocation4], 16
    $region45: #{tpu_custom_call.1} parent=1 // pred_fallthru
      _
    %336 = vsyncpa [#allocation4], 1
    %337 = vsyncpa [#allocation5], 1

</llo_original>
